<compile_context>
chip_gen: v5e
topology: v5e:2x2
jax: 0.10.0
libtpu: 0.0.40
codegen_flags: <defaults>
</compile_context>

<pallas_src>
import functools

import jax
import jax.numpy as jnp
from jax.experimental import pallas as pl
from jax.experimental.pallas import tpu as pltpu


def _ce_kernel(logits_ref, tgt_ref, w_ref, acc_ref, *, ignore_index,
               apply_valid_mask, hw):
    s = pl.program_id(1)   # pixel-axis core split (parallel)
    j = pl.program_id(2)   # pixel-tile reduction axis (arbitrary)

    @pl.when(j == 0)
    def _():
        acc_ref[...] = jnp.zeros_like(acc_ref)

    x = logits_ref[...].astype(jnp.float32)      # (C, T) classes on sublanes
    t = tgt_ref[...]                             # (1, T) int32 labels
    w = w_ref[...].astype(jnp.float32)           # (C, 1) class weights

    C, T = x.shape
    ids = jax.lax.broadcasted_iota(jnp.int32, (C, T), 0)
    eq = ids == t                                # (C, T) target one-hot mask

    # stable log-sum-exp over classes (sublane reductions)
    m = jnp.max(x, axis=0, keepdims=True)                              # (1, T)
    lse = m + jnp.log(jnp.sum(jnp.exp(x - m), axis=0, keepdims=True))  # (1, T)

    # selects instead of one-hot cast + multiplies (VALU trim)
    logit_t = jnp.sum(jnp.where(eq, x, 0.0), axis=0, keepdims=True)    # (1, T)
    w_t = jnp.sum(jnp.where(eq, w, 0.0), axis=0, keepdims=True)        # (1, T)
    if apply_valid_mask:  # only needed when ignore_index is a real class id
        w_t = jnp.where(t != ignore_index, w_t, 0.0)

    nll = lse - logit_t                                                # (1, T)

    # Ragged-tail mask (no HBM padding of logits): zero BOTH terms with
    # jnp.where so NaN/Inf from garbage out-of-bounds lanes cannot propagate.
    tile_idx = s * pl.num_programs(2) + j
    lane = jax.lax.broadcasted_iota(jnp.int32, (1, T), 1)
    in_range = (tile_idx * T + lane) < hw

    acc_ref[...] = acc_ref[...] + jnp.concatenate(
        [jnp.where(in_range, w_t * nll, 0.0),
         jnp.where(in_range, w_t, 0.0)], axis=0)                       # (2, T)


def dynamic_segmentation_loss(preds, targets, base_weights, *, current_step,
                              max_steps, ignore_index=255):
    """Weighted cross-entropy with ignore_index (mean reduction, PyTorch semantics)."""
    N, C, H, W = preds.shape
    assert targets.shape == (N, H, W)
    HW = H * W

    decay = 1.0 - current_step / max_steps
    weights = 1.0 + (base_weights.astype(jnp.float32) - 1.0) * decay   # (C,)

    # NCHW is already classes-on-sublanes / pixels-on-lanes: (N, C, H*W) is a
    # free view, no transpose, no dtype up-cast in HBM.
    logits = preds.reshape(N, C, HW)
    tgt = targets.reshape(N, 1, HW).astype(jnp.int32)

    # --- class-count-aware, VMEM-budgeted lane tile --------------------------
    dtype_bytes = preds.dtype.itemsize
    tile_pix = (4 << 20) // (C * dtype_bytes)                        # ~4 MiB block
    tile_pix = min(tile_pix, (12 << 20) // (2 * C * dtype_bytes + 24))  # v5e-safe
    tile_pix = max(1024, min(tile_pix, 65536))
    tile_pix = (tile_pix // 512) * 512
    tile_pix = min(tile_pix, pl.cdiv(HW, 128) * 128)                 # tiny inputs
    tile_pix = max(128, tile_pix)

    num_tiles = pl.cdiv(HW, tile_pix)
    # 2-way split of the pixel axis so both v7x TensorCores have work even at
    # N == 1; enabled only for an even tile count (no OOB block indices).
    nsplit = 2 if (num_tiles >= 2 and num_tiles % 2 == 0) else 1
    tps = num_tiles // nsplit

    kernel = functools.partial(
        _ce_kernel, ignore_index=ignore_index,
        apply_valid_mask=(ignore_index < C), hw=HW)

    parts = pl.pallas_call(
        kernel,
        out_shape=jax.ShapeDtypeStruct((N, nsplit, 2, tile_pix), jnp.float32),
        grid_spec=pltpu.PrefetchScalarGridSpec(
            num_scalar_prefetch=0,
            grid=(N, nsplit, tps),
            in_specs=[
                # (C, tile_pix) logits block; leading batch dim squeezed
                pl.BlockSpec((None, C, tile_pix),
                             lambda n, s, j: (n, 0, s * tps + j)),
                # (1, tile_pix) targets block
                pl.BlockSpec((None, 1, tile_pix),
                             lambda n, s, j: (n, 0, s * tps + j)),
                # (C, 1) class weights, constant across the grid
                pl.BlockSpec((C, 1), lambda n, s, j: (0, 0)),
            ],
            # merged (loss, wsum) lane-dense partials, resident across j
            out_specs=pl.BlockSpec((None, None, 2, tile_pix),
                                   lambda n, s, j: (n, s, 0, 0)),
        ),
        compiler_params=pltpu.CompilerParams(
            dimension_semantics=("parallel", "parallel", "arbitrary"),
            vmem_limit_bytes=32 << 20),
    )(logits, tgt, weights.reshape(C, 1))

    # Tiny final reduction in plain JAX (matches torch mean-with-weights).
    # NaN if every pixel is ignored -- same as PyTorch.
    return jnp.sum(parts[:, :, 0, :]) / jnp.sum(parts[:, :, 1, :])


def _reference_loss(preds, targets, base_weights, *, current_step, max_steps,
                    ignore_index=255):
    """Pure-JAX reference matching torch.nn.CrossEntropyLoss(weight, ignore_index)."""
    N, C, H, W = preds.shape
    decay = 1.0 - current_step / max_steps
    weights = 1.0 + (base_weights.astype(jnp.float32) - 1.0) * decay
    logits = jnp.transpose(preds, (0, 2, 3, 1)).reshape(-1, C).astype(jnp.float32)
    t = targets.reshape(-1)
    valid = (t != ignore_index)
    t_safe = jnp.where(valid, t, 0)
    logp = jax.nn.log_softmax(logits, axis=-1)
    nll = -jnp.take_along_axis(logp, t_safe[:, None], axis=1)[:, 0]
    w = weights[t_safe] * valid.astype(jnp.float32)
    return jnp.sum(w * nll) / jnp.sum(w)


if __name__ == "__main__":
    key = jax.random.PRNGKey(0)
    k1, k2, k3 = jax.random.split(key, 3)

    N, C, H, W = 2, 8, 16, 16
    ignore_index = 255
    current_step, max_steps = 250, 1000

    preds = jax.random.normal(k1, (N, C, H, W), dtype=jnp.float32)
    targets = jax.random.randint(k2, (N, H, W), 0, C, dtype=jnp.int32)
    # mark ~12% of pixels as ignored
    ignore_mask = jax.random.uniform(k3, (N, H, W)) < 0.125
    targets = jnp.where(ignore_mask, ignore_index, targets)

    # deterministic "class weights" (what the module receives in __init__)
    base_weights = jnp.linspace(0.5, 2.0, C, dtype=jnp.float32)

    loss = dynamic_segmentation_loss(
        preds, targets, base_weights,
        current_step=current_step, max_steps=max_steps,
        ignore_index=ignore_index)
    loss = jax.block_until_ready(loss)

    ref = _reference_loss(
        preds, targets, base_weights,
        current_step=current_step, max_steps=max_steps,
        ignore_index=ignore_index)
    ref = jax.block_until_ready(ref)

    assert jnp.allclose(loss, ref, rtol=1e-5, atol=1e-5), (loss, ref)
    print("KERNEL_OK")
</pallas_src>

<mosaic_0001>
module attributes {stable_mosaic.version = 11 : i64} {
  func.func @_ce_kernel(%arg0: i32, %arg1: i32, %arg2: i32, %arg3: memref<1x8x256xf32, #tpu.memory_space<vmem>>, %arg4: memref<1x1x256xi32, #tpu.memory_space<vmem>>, %arg5: memref<8x1xf32, #tpu.memory_space<vmem>>, %arg6: memref<1x1x2x256xf32, #tpu.memory_space<vmem>>) attributes {dimension_semantics = [#tpu.dimension_semantics<parallel>, #tpu.dimension_semantics<parallel>, #tpu.dimension_semantics<arbitrary>], iteration_bounds = array<i64: 2, 1, 1>, scalar_prefetch = 0 : i64, scratch_operands = 0 : i64, tpu.core_type = #tpu.core_type<tc>, window_params = [{transform_indices = @transform_0, window_bounds = array<i64: 1, 8, 256>}, {transform_indices = @transform_1, window_bounds = array<i64: 1, 1, 256>}, {pipeline_mode = #tpu.pipeline_mode<synchronous>, transform_indices = @transform_2, window_bounds = array<i64: 8, 1>}, {transform_indices = @transform_3, window_bounds = array<i64: 1, 1, 2, 256>}]} {
    %c0_i32 = arith.constant 0 : i32
    %0 = arith.cmpi eq, %arg2, %c0_i32 : i32
    %1 = arith.extui %0 : i1 to i32
    %c0_i32_0 = arith.constant 0 : i32
    %2 = arith.cmpi ne, %1, %c0_i32_0 : i32
    scf.if %2 {
      %cst_24 = arith.constant 0.000000e+00 : f32
      %51 = vector.broadcast %cst_24 : f32 to vector<2x256xf32>
      %c0_25 = arith.constant 0 : index
      %c0_26 = arith.constant 0 : index
      %c0_27 = arith.constant 0 : index
      %c0_28 = arith.constant 0 : index
      %52 = vector.load %arg6[%c0_25, %c0_26, %c0_27, %c0_28] : memref<1x1x2x256xf32, #tpu.memory_space<vmem>>, vector<1x1x2x256xf32>
      %53 = vector.shape_cast %52 : vector<1x1x2x256xf32> to vector<2x256xf32>
      %54 = vector.shape_cast %51 : vector<2x256xf32> to vector<1x1x2x256xf32>
      tpu.vector_store %arg6[%c0_25, %c0_26, %c0_27, %c0_28], %54 {strides = array<i32>} : memref<1x1x2x256xf32, #tpu.memory_space<vmem>>, vector<1x1x2x256xf32>,
    } else {
    }
    %c0 = arith.constant 0 : index
    %c0_1 = arith.constant 0 : index
    %c0_2 = arith.constant 0 : index
    %3 = vector.load %arg3[%c0, %c0_1, %c0_2] : memref<1x8x256xf32, #tpu.memory_space<vmem>>, vector<1x8x256xf32>
    %4 = vector.shape_cast %3 : vector<1x8x256xf32> to vector<8x256xf32>
    %c0_3 = arith.constant 0 : index
    %c0_4 = arith.constant 0 : index
    %c0_5 = arith.constant 0 : index
    %5 = vector.load %arg4[%c0_3, %c0_4, %c0_5] : memref<1x1x256xi32, #tpu.memory_space<vmem>>, vector<1x1x256xi32>
    %6 = vector.shape_cast %5 : vector<1x1x256xi32> to vector<1x256xi32>
    %c0_6 = arith.constant 0 : index
    %c0_7 = arith.constant 0 : index
    %7 = vector.load %arg5[%c0_6, %c0_7] : memref<8x1xf32, #tpu.memory_space<vmem>>, vector<8x1xf32>
    %8 = tpu.iota {dimensions = array<i32: 0>} : vector<8x256xi32>
    %9 = vector.broadcast %6 : vector<1x256xi32> to vector<8x256xi32>
    %10 = arith.cmpi eq, %8, %9 : vector<8x256xi32>
    %cst = arith.constant dense<0xFF800000> : vector<256xf32>
    %11 = vector.multi_reduction <maximumf>, %4, %cst [0] : vector<8x256xf32> to vector<256xf32>
    %12 = vector.shape_cast %11 : vector<256xf32> to vector<1x256xf32>
    %13 = vector.broadcast %12 : vector<1x256xf32> to vector<8x256xf32>
    %14 = arith.subf %4, %13 : vector<8x256xf32>
    %15 = math.exp %14 : vector<8x256xf32>
    %cst_8 = arith.constant dense<0.000000e+00> : vector<256xf32>
    %16 = vector.multi_reduction <add>, %15, %cst_8 [0] : vector<8x256xf32> to vector<256xf32>
    %17 = vector.shape_cast %16 : vector<256xf32> to vector<1x256xf32>
    %18 = math.log %17 : vector<1x256xf32>
    %19 = arith.addf %12, %18 : vector<1x256xf32>
    %cst_9 = arith.constant 0.000000e+00 : f32
    %20 = vector.broadcast %cst_9 : f32 to vector<8x256xf32>
    %21 = arith.select %10, %4, %20 : vector<8x256xi1>, vector<8x256xf32>
    %cst_10 = arith.constant dense<0.000000e+00> : vector<256xf32>
    %22 = vector.multi_reduction <add>, %21, %cst_10 [0] : vector<8x256xf32> to vector<256xf32>
    %23 = vector.shape_cast %22 : vector<256xf32> to vector<1x256xf32>
    %cst_11 = arith.constant 0.000000e+00 : f32
    %24 = vector.shape_cast %7 : vector<8x1xf32> to vector<8x1xf32>
    %25 = vector.broadcast %24 : vector<8x1xf32> to vector<8x256xf32>
    %26 = vector.broadcast %cst_11 : f32 to vector<8x256xf32>
    %27 = arith.select %10, %25, %26 : vector<8x256xi1>, vector<8x256xf32>
    %cst_12 = arith.constant dense<0.000000e+00> : vector<256xf32>
    %28 = vector.multi_reduction <add>, %27, %cst_12 [0] : vector<8x256xf32> to vector<256xf32>
    %29 = vector.shape_cast %28 : vector<256xf32> to vector<1x256xf32>
    %30 = arith.subf %19, %23 : vector<1x256xf32>
    %c1_i32 = arith.constant 1 : i32
    %31 = arith.muli %arg1, %c1_i32 : i32
    %32 = arith.addi %31, %arg2 : i32
    %33 = tpu.iota {dimensions = array<i32: 1>} : vector<1x256xi32>
    %c256_i32 = arith.constant 256 : i32
    %34 = arith.muli %32, %c256_i32 : i32
    %35 = vector.broadcast %34 : i32 to vector<1x256xi32>
    %36 = arith.addi %35, %33 : vector<1x256xi32>
    %c256_i32_13 = arith.constant 256 : i32
    %37 = vector.broadcast %c256_i32_13 : i32 to vector<1x256xi32>
    %38 = arith.cmpi slt, %36, %37 : vector<1x256xi32>
    %c0_14 = arith.constant 0 : index
    %c0_15 = arith.constant 0 : index
    %c0_16 = arith.constant 0 : index
    %c0_17 = arith.constant 0 : index
    %39 = vector.load %arg6[%c0_14, %c0_15, %c0_16, %c0_17] : memref<1x1x2x256xf32, #tpu.memory_space<vmem>>, vector<1x1x2x256xf32>
    %40 = vector.shape_cast %39 : vector<1x1x2x256xf32> to vector<2x256xf32>
    %41 = arith.mulf %29, %30 : vector<1x256xf32>
    %cst_18 = arith.constant 0.000000e+00 : f32
    %42 = vector.broadcast %cst_18 : f32 to vector<1x256xf32>
    %43 = arith.select %38, %41, %42 : vector<1x256xi1>, vector<1x256xf32>
    %cst_19 = arith.constant 0.000000e+00 : f32
    %44 = vector.broadcast %cst_19 : f32 to vector<1x256xf32>
    %45 = arith.select %38, %29, %44 : vector<1x256xi1>, vector<1x256xf32>
    %46 = tpu.concatenate %43, %45 in 0 : vector<1x256xf32>, vector<1x256xf32> -> vector<2x256xf32>
    %47 = arith.addf %40, %46 : vector<2x256xf32>
    %c0_20 = arith.constant 0 : index
    %c0_21 = arith.constant 0 : index
    %c0_22 = arith.constant 0 : index
    %c0_23 = arith.constant 0 : index
    %48 = vector.load %arg6[%c0_20, %c0_21, %c0_22, %c0_23] : memref<1x1x2x256xf32, #tpu.memory_space<vmem>>, vector<1x1x2x256xf32>
    %49 = vector.shape_cast %48 : vector<1x1x2x256xf32> to vector<2x256xf32>
    %50 = vector.shape_cast %47 : vector<2x256xf32> to vector<1x1x2x256xf32>
    tpu.vector_store %arg6[%c0_20, %c0_21, %c0_22, %c0_23], %50 {strides = array<i32>} : memref<1x1x2x256xf32, #tpu.memory_space<vmem>>, vector<1x1x2x256xf32>,
    return
  }
  func.func @transform_0(%arg0: i32, %arg1: i32, %arg2: i32) -> (i32, i32, i32) {
    %c1_i32 = arith.constant 1 : i32
    %0 = arith.muli %arg1, %c1_i32 : i32
    %1 = arith.addi %0, %arg2 : i32
    %c0_i32 = arith.constant 0 : i32
    %c0_i32_0 = arith.constant 0 : i32
    return %arg0, %c0_i32, %1 : i32, i32, i32
  }
  func.func @transform_1(%arg0: i32, %arg1: i32, %arg2: i32) -> (i32, i32, i32) {
    %c1_i32 = arith.constant 1 : i32
    %0 = arith.muli %arg1, %c1_i32 : i32
    %1 = arith.addi %0, %arg2 : i32
    %c0_i32 = arith.constant 0 : i32
    %c0_i32_0 = arith.constant 0 : i32
    return %arg0, %c0_i32, %1 : i32, i32, i32
  }
  func.func @transform_2(%arg0: i32, %arg1: i32, %arg2: i32) -> (i32, i32) {
    %c0_i32 = arith.constant 0 : i32
    %c0_i32_0 = arith.constant 0 : i32
    %c0_i32_1 = arith.constant 0 : i32
    return %c0_i32, %c0_i32_0 : i32, i32
  }
  func.func @transform_3(%arg0: i32, %arg1: i32, %arg2: i32) -> (i32, i32, i32, i32) {
    %c0_i32 = arith.constant 0 : i32
    %c0_i32_0 = arith.constant 0 : i32
    %c0_i32_1 = arith.constant 0 : i32
    return %arg0, %arg1, %c0_i32, %c0_i32_0 : i32, i32, i32, i32
  }
}

</mosaic_0001>

<llo_original>
// kernel: tpu_custom_call.1
$region0: #{tpu_custom_call.1}
  #allocation0 [shape = 'u32[]', space=smem, size = 0x4, offset = 0x4, fixed_abs, tag = 'smem constant byte address 0x4 - core index']
  #allocation1 [shape = 'u32[72,128]{1,0:T(1,128)}', space=vmem, size = 0x9000, scoped, tag = 'internal scratch']
  %s0 = inlined_call_operand.hbm [shape: f32[2,8,256], index: 0, kind: input, shape index: {}]
  %s1 = inlined_call_operand.vmem [shape: s32[2,1,256], index: 1, kind: input, shape index: {}]
  %s2 = inlined_call_operand.vmem [shape: f32[8,1], index: 2, kind: input, shape index: {}]
  %s3 = inlined_call_operand.hbm [shape: f32[2,1,2,256], index: 3, kind: output, shape index: {}]
  %s4 = sld [smem:[#allocation0]]
  $region53: #{tpu_custom_call.1} parent=0
    _
  %s6 = ssub.s32 1, %s4
  %s7 = scalar_select 0, %s6, %s4
  $region1: #{tpu_custom_call.1} parent=0
    #allocation2 [shape = 'u8[16384]{0}', space=vmem, size = 0x4000, scoped, tag = 'input window, operand 0']
    #allocation3 [shape = 's32[2]{0}', space=sflag, size = 0x8, scoped, tag = 'scoped memory for tpu_custom_call.1']
    #allocation4 [shape = 's32[2]{0}', space=sflag, size = 0x8, scoped, tag = 'scoped memory for tpu_custom_call.1']
    #allocation5 [shape = 'u8[4096]{0}', space=vmem, size = 0x1000, scoped, tag = 'output window, operand 0']
    %8 = vsyncpa [#allocation3], 0
    %s9 = scalar_lea.sflag [#allocation3], 1
    %10 = vsyncpa %s9, 0
    %11 = vsyncpa [#allocation4], 0
    %s12 = scalar_lea.sflag [#allocation4], 1
    %13 = vsyncpa %s12, 0
    loop: start=0, step=1, limit=4
    $region2: #{tpu_custom_call.1} parent=1 // loop_pre_header
      _
    $region3: #{tpu_custom_call.1} parent=1 // loop_header
      %s15 = sphi 0, %s19
      %p16 = scmp.ge.s32.totalorder %s15, 4
      %s22 = sphi 0, %s41
      %s23 = sphi 0, %s37
      %s24 = sphi 0, %s33
      %s25 = sphi 0, %s22
      %s26 = sphi 0, %s23
      %s27 = sphi 0, %s24
      %s28 = sphi 0, %s25
      %s29 = sphi 0, %s26
      %s30 = sphi 0, %s27
      %s48 = sphi 0, %s50
      %s51 = sphi 0, %s48
      %s52 = sphi 0, %s51
      %s68 = sphi 0, %s52
      %s78 = sphi 0, %s80
      %s81 = sphi 0, %s78
      %s82 = sphi 0, %s81
      %s98 = sphi 0, %s82
      %s102 = sphi 0, %s102
      %s104 = sphi 0, %s102
      %s105 = sphi 0, %s104
      %s119 = sphi 0, %s105
      %s127 = sphi 0, %s129
      %s130 = sphi 0, %s127
      %s131 = sphi 0, %s130
      %s147 = sphi 0, %s131
    $region4: #{tpu_custom_call.1} parent=1 // loop_header_branch
      %18 = sbr.rel (%p16) target = $region8
    $region5: #{tpu_custom_call.1} parent=1 // loop_body
      %s20 = ssub.s32 %s15, 1
      %s21 = ssub.s32 %s15, 2
      %s31 = sadd.s32 1, %s24
      %p32 = scmp.ge.s32.totalorder %s31, 1
      %s33 = scalar_select %p32, 0, %s31
      %s34 = sadd.s32 1, %s23
      %s35 = scalar_select %p32, %s34, %s23
      %p36 = scmp.ge.s32.totalorder %s35, 1
      %s37 = scalar_select %p36, 0, %s35
      %s38 = sadd.s32 1, %s22
      %s39 = scalar_select %p36, %s38, %s22
      %p40 = scmp.ge.s32.totalorder %s39, 2
      %s41 = scalar_select %p40, 0, %s39
      %s42 = sadd.s32 %s23, %s24
      %s43 = sadd.s32 %s37, %s33
      %s44 = ssub.s32 %s22, %s41
      %s45 = ssub.s32 %s42, %s43
      %s46 = sor.u32 %s44, %s45
      %p47 = scmp.eq.s32.totalorder %s46, 0
      %s49 = sadd.s32 %s48, 1
      %s50 = scalar_select %p47, %s48, %s49
      %p53 = pneg %p47
      %p54 = scmp.eq.s32.totalorder %s15, 1
      %p55 = por %p53, %p54
      %p56 = scmp.ne.s32.totalorder %s48, %s51
      %p57 = scmp.eq.s32.totalorder %s15, 0
      %p58 = por %p56, %p57
      %p59 = scmp.ne.s32.totalorder %s48, %s51
      %p60 = scmp.eq.s32.totalorder %s20, 1
      %p61 = por %p59, %p60
      %p62 = scmp.ne.s32.totalorder %s51, %s52
      %p63 = scmp.eq.s32.totalorder %s20, 0
      %p64 = por %p62, %p63
      %p65 = scmp.ne.s32.totalorder %s51, %s52
      %p66 = scmp.eq.s32.totalorder %s21, 1
      %p67 = por %p65, %p66
      %p69 = scmp.ne.s32.totalorder %s52, %s68
      %p70 = scmp.eq.s32.totalorder %s21, 0
      %p71 = por %p69, %p70
      %s72 = sadd.s32 %s23, %s24
      %s73 = sadd.s32 %s37, %s33
      %s74 = ssub.s32 %s22, %s41
      %s75 = ssub.s32 %s72, %s73
      %s76 = sor.u32 %s74, %s75
      %p77 = scmp.eq.s32.totalorder %s76, 0
      %s79 = sadd.s32 %s78, 1
      %s80 = scalar_select %p77, %s78, %s79
      %p83 = pneg %p77
      %p84 = scmp.eq.s32.totalorder %s15, 1
      %p85 = por %p83, %p84
      %p86 = scmp.ne.s32.totalorder %s78, %s81
      %p87 = scmp.eq.s32.totalorder %s15, 0
      %p88 = por %p86, %p87
      %p89 = scmp.ne.s32.totalorder %s78, %s81
      %p90 = scmp.eq.s32.totalorder %s20, 1
      %p91 = por %p89, %p90
      %p92 = scmp.ne.s32.totalorder %s81, %s82
      %p93 = scmp.eq.s32.totalorder %s20, 0
      %p94 = por %p92, %p93
      %p95 = scmp.ne.s32.totalorder %s81, %s82
      %p96 = scmp.eq.s32.totalorder %s21, 1
      %p97 = por %p95, %p96
      %p99 = scmp.ne.s32.totalorder %s82, %s98
      %p100 = scmp.eq.s32.totalorder %s21, 0
      %p101 = por %p99, %p100
      %s103 = sadd.s32 %s102, 1
      %p106 = scmp.eq.s32.totalorder %s15, 1
      %p107 = scmp.ne.s32.totalorder %s102, %s104
      %p108 = scmp.eq.s32.totalorder %s15, 0
      %p109 = por %p107, %p108
      %p110 = scmp.ne.s32.totalorder %s102, %s104
      %p111 = scmp.eq.s32.totalorder %s20, 1
      %p112 = por %p110, %p111
      %p113 = scmp.ne.s32.totalorder %s104, %s105
      %p114 = scmp.eq.s32.totalorder %s20, 0
      %p115 = por %p113, %p114
      %p116 = scmp.ne.s32.totalorder %s104, %s105
      %p117 = scmp.eq.s32.totalorder %s21, 1
      %p118 = por %p116, %p117
      %p120 = scmp.ne.s32.totalorder %s105, %s119
      %p121 = scmp.eq.s32.totalorder %s21, 0
      %p122 = por %p120, %p121
      %s123 = ssub.s32 %s22, %s41
      %s124 = ssub.s32 %s23, %s37
      %s125 = sor.u32 %s123, %s124
      %p126 = scmp.eq.s32.totalorder %s125, 0
      %s128 = sadd.s32 %s127, 1
      %s129 = scalar_select %p126, %s127, %s128
      %p132 = pneg %p126
      %p133 = scmp.eq.s32.totalorder %s15, 1
      %p134 = por %p132, %p133
      %p135 = scmp.ne.s32.totalorder %s127, %s130
      %p136 = scmp.eq.s32.totalorder %s15, 0
      %p137 = por %p135, %p136
      %p138 = scmp.ne.s32.totalorder %s127, %s130
      %p139 = scmp.eq.s32.totalorder %s20, 1
      %p140 = por %p138, %p139
      %p141 = scmp.ne.s32.totalorder %s130, %s131
      %p142 = scmp.eq.s32.totalorder %s20, 0
      %p143 = por %p141, %p142
      %p144 = scmp.ne.s32.totalorder %s130, %s131
      %p145 = scmp.eq.s32.totalorder %s21, 1
      %p146 = por %p144, %p145
      %p148 = scmp.ne.s32.totalorder %s131, %s147
      %p149 = scmp.eq.s32.totalorder %s21, 0
      %p150 = por %p148, %p149
      %p151 = scmp.le.s32.totalorder 1, %s15
      %p152 = scmp.lt.s32.totalorder %s15, 3
      %p153 = pnand %p151, %p152
      %p154 = pneg %p153
      // Predicated region
      $region9: #{tpu_custom_call.1} parent=5 // pred_check
        _
      $region10: #{tpu_custom_call.1} parent=5 // pred_check_branch
        %156 = sbr.rel (%p153) target = $region12
      $region11: #{tpu_custom_call.1} parent=5 // pred_region
        %s157 = ssub.s32 %s15, 1
        // Predicated region
        $region13: #{tpu_custom_call.1} parent=11 // pred_check
          %p158 = pneg %p115
        $region14: #{tpu_custom_call.1} parent=11 // pred_check_branch
          %160 = sbr.rel (%p158) target = $region16
        $region15: #{tpu_custom_call.1} parent=11 // pred_region
          _
        $region16: #{tpu_custom_call.1} parent=11 // pred_fallthru
          _
      $region12: #{tpu_custom_call.1} parent=5 // pred_fallthru
        _
      %p161 = scmp.lt.s32.totalorder %s15, 2
      // Predicated region
      $region17: #{tpu_custom_call.1} parent=5 // pred_check
        %p162 = pneg %p161
      $region18: #{tpu_custom_call.1} parent=5 // pred_check_branch
        %164 = sbr.rel (%p162) target = $region20
      $region19: #{tpu_custom_call.1} parent=5 // pred_region
        // Predicated region
        $region21: #{tpu_custom_call.1} parent=19 // pred_check
          %p165 = pneg %p58
        $region22: #{tpu_custom_call.1} parent=19 // pred_check_branch
          %167 = sbr.rel (%p165) target = $region24
        $region23: #{tpu_custom_call.1} parent=19 // pred_region
          %s168 = sand.u32 %s48, 1
          %s169 = scalar_lea.sflag [#allocation3], %s168
          %s170 = sand.u32 %s48, 1
          %s171 = smul.addr %s170, 16
          %s172 = scalar_lea.vmem [#allocation2], %s171
          %s173 = sadd.s32 %s23, %s24
          %s174 = smul.u32 2, %s173
          %176 = vsyncadd %s169, 0
          %s177 = smul.addr %s22, 2
          %s178 = sadd.s32 %s174, %s177
          %s179 = smul.addr %s178, 8
          %s180 = scalar_lea.hbm %s0, %s179
          %s182 = sshll.u32 %s180, 4
          %s183 = int_to_ptr.hbm [resolvable:$true] %s182
          %s184 = sshll.u32 %s172, 4
          %s185 = int_to_ptr.vmem [resolvable:$true] %s184
          %187 = dma.hbm_to_vmem [thread:$0]  %s183, 256, %s185, %s169
        $region24: #{tpu_custom_call.1} parent=19 // pred_fallthru
          _
        // Predicated region
        $region25: #{tpu_custom_call.1} parent=19 // pred_check
          %p188 = pneg %p88
        $region26: #{tpu_custom_call.1} parent=19 // pred_check_branch
          %190 = sbr.rel (%p188) target = $region28
        $region27: #{tpu_custom_call.1} parent=19 // pred_region
          %s191 = sadd.s32 %s23, %s24
          %s192 = smul.u32 2, %s191
          %p193 = scmp.lt.s32.totalorder %s22, 1
          %s194 = scalar_select %p193, %s22, 1
          %p195 = scmp.lt.s32.totalorder %s192, 1
          %s196 = scalar_select %p195, %s192, 1
          %s197 = smul.addr %s194, 2
          %s198 = sadd.s32 %s196, %s197
          %s199 = scalar_lea.vmem %s1, %s198
          %s200 = sadd.s32 %s23, %s24
          %s201 = smul.u32 2, %s200
        $region28: #{tpu_custom_call.1} parent=19 // pred_fallthru
          _
      $region20: #{tpu_custom_call.1} parent=5 // pred_fallthru
        _
      %p202 = scmp.le.s32.totalorder 1, %s15
      %p203 = scmp.lt.s32.totalorder %s15, 3
      %p204 = pnand %p202, %p203
      %p205 = pneg %p204
      // Predicated region
      $region29: #{tpu_custom_call.1} parent=5 // pred_check
        _
      $region30: #{tpu_custom_call.1} parent=5 // pred_check_branch
        %207 = sbr.rel (%p204) target = $region32
      $region31: #{tpu_custom_call.1} parent=5 // pred_region
        %s208 = ssub.s32 %s15, 1
        %s209 = sand.u32 %s51, 1
        %s210 = scalar_lea.sflag [#allocation3], %s209
        %s211 = sand.u32 %s51, 1
        %s212 = smul.addr %s211, 16
        %s213 = scalar_lea.vmem [#allocation2], %s212
        // Predicated region
        $region33: #{tpu_custom_call.1} parent=31 // pred_check
          %p214 = pneg %p64
        $region34: #{tpu_custom_call.1} parent=31 // pred_check_branch
          %216 = sbr.rel (%p214) target = $region36
        $region35: #{tpu_custom_call.1} parent=31 // pred_region
          %218 = dma.done %s210, 256
        $region36: #{tpu_custom_call.1} parent=31 // pred_fallthru
          _
        %s219 = sand.u32 %s51, 1
        %s220 = scalar_lea.sflag [#allocation3], %s219
        %s221 = sand.u32 %s51, 1
        %s222 = smul.addr %s221, 16
        %s223 = scalar_lea.vmem [#allocation2], %s222
        %p224 = pneg %p64
        %p225 = pneg %p61
        %s226 = sadd.s32 %s26, %s27
        %s227 = smul.u32 2, %s226
        %p228 = scmp.lt.s32.totalorder %s25, 1
        %s229 = scalar_select %p228, %s25, 1
        %p230 = scmp.lt.s32.totalorder %s227, 1
        %s231 = scalar_select %p230, %s227, 1
        %s232 = smul.addr %s229, 2
        %s233 = sadd.s32 %s231, %s232
        %s234 = scalar_lea.vmem %s1, %s233
        %p235 = pneg %p94
        %p236 = pneg %p91
        %p237 = pneg %p115
        %p238 = pneg %p112
        %p239 = pneg %p143
        %p240 = pneg %p140
        %s241 = sand.u32 %s130, 1
        %s242 = scalar_lea.sflag [#allocation4], %s241
        %s243 = sand.u32 %s130, 1
        %s244 = smul.addr %s243, 4
        %s245 = scalar_lea.vmem [#allocation5], %s244
        %s246 = sadd.s32 %s26, %s27
        %s247 = smul.u32 2, %s246
        %s248 = sadd.s32 %s26, %s27
        %s249 = smul.u32 2, %s248
        %p250 = scmp.lt.s32.totalorder %s25, 1
        %s251 = scalar_select %p250, %s25, 1
        %p252 = scmp.lt.s32.totalorder %s249, 1
        %s253 = scalar_select %p252, %s249, 1
        %s254 = smul.addr %s251, 2
        %s255 = sadd.s32 %s253, %s254
        %s256 = scalar_lea.vmem %s1, %s255
        %s257 = sadd.s32 %s26, %s27
        %s258 = smul.u32 2, %s257
        %p259 = scmp.eq.s32.totalorder %s27, 0
        // Predicated region
        $region37: #{tpu_custom_call.1} parent=31 // pred_check
          %p260 = pneg %p259
        $region38: #{tpu_custom_call.1} parent=31 // pred_check_branch
          %262 = sbr.rel (%p260) target = $region40
        $region39: #{tpu_custom_call.1} parent=31 // pred_region
          %263 = vst [vmem:[%s245] sm:$0xf] 0.0
        $region40: #{tpu_custom_call.1} parent=31 // pred_fallthru
          _
        %v264 = vld [vmem:[%s213] sm:$0xff]
        %v265 = vld [vmem:[%s213 + $0x8] sm:$0xff]
        %v266 = vld [vmem:[%s256] sm:$0x3]
        %v267 = vld [vmem:[%s2] sm:$0xff]
        %v268 = vlaneseq
        %v269 = vshrl.u32 %v268, 7
        %v270 = vperm.slane %v266, 0
        %v271 = vperm.slane %v266, 1
        %vm272 = vcmp.eq.s32.totalorder %v269, %v270
        %vm273 = vcmp.eq.s32.totalorder %v269, %v271
        %v274 = vrot.slane %v264, 4
        %v275 = vmax.f32 %v264, %v274
        %v276 = vrot.slane %v275, 2
        %v277 = vmax.f32 %v275, %v276
        %v278 = vrot.slane %v277, 1
        %v279 = vmax.f32 %v277, %v278
        %v280 = vrot.slane %v265, 4
        %v281 = vmax.f32 %v265, %v280
        %v282 = vrot.slane %v281, 2
        %v283 = vmax.f32 %v281, %v282
        %v284 = vrot.slane %v283, 1
        %v285 = vmax.f32 %v283, %v284
        %v286 = vsub.f32 %v264, %v279
        %v287 = vsub.f32 %v265, %v285
        %v288 = vmul.f32 %v286, 1.442695
        %v289 = vpow.pop %v288
        %v290 = vmul.f32 %v287, 1.442695
        %v291 = vpow.pop %v290
        %v292 = vrot.slane %v289, 4
        %v293 = vadd.f32 %v289, %v292
        %v294 = vrot.slane %v293, 2
        %v295 = vadd.f32 %v293, %v294
        %v296 = vrot.slane %v295, 1
        %v297 = vadd.f32 %v295, %v296
        %v298 = vrot.slane %v291, 4
        %v299 = vadd.f32 %v291, %v298
        %v300 = vrot.slane %v299, 2
        %v301 = vadd.f32 %v299, %v300
        %v302 = vrot.slane %v301, 1
        %v303 = vadd.f32 %v301, %v302
        %v304 = vlog2.pop %v297
        %v305 = vmul.f32 %v304, 0.6931472
        %v306 = vlog2.pop %v303
        %v307 = vmul.f32 %v306, 0.6931472
        %v308 = vadd.f32 %v279, %v305
        %v309 = vadd.f32 %v285, %v307
        %v310 = vsel %vm272, %v264, 0.0
        %v311 = vsel %vm273, %v265, 0.0
        %v312 = vrot.slane %v310, 4
        %v313 = vadd.f32 %v310, %v312
        %v314 = vrot.slane %v313, 2
        %v315 = vadd.f32 %v313, %v314
        %v316 = vrot.slane %v315, 1
        %v317 = vadd.f32 %v315, %v316
        %v318 = vrot.slane %v311, 4
        %v319 = vadd.f32 %v311, %v318
        %v320 = vrot.slane %v319, 2
        %v321 = vadd.f32 %v319, %v320
        %v322 = vrot.slane %v321, 1
        %v323 = vadd.f32 %v321, %v322
        %325 = vset.pattern.permute.xlu0 0
        %326 = vperm.xlu0 %325, %v267
        %v327 = vpop.permute.xlu0 %326
        %v329 = vsel %vm272, %v327, 0.0
        %v330 = vsel %vm273, %v327, 0.0
        %v331 = vrot.slane %v329, 4
        %v332 = vadd.f32 %v329, %v331
        %v333 = vrot.slane %v332, 2
        %v334 = vadd.f32 %v332, %v333
        %v335 = vrot.slane %v334, 1
        %v336 = vadd.f32 %v334, %v335
        %v337 = vrot.slane %v330, 4
        %v338 = vadd.f32 %v330, %v337
        %v339 = vrot.slane %v338, 2
        %v340 = vadd.f32 %v338, %v339
        %v341 = vrot.slane %v340, 1
        %v342 = vadd.f32 %v340, %v341
        %v343 = vsub.f32 %v308, %v317
        %v344 = vsub.f32 %v309, %v323
        %s345 = sadd.s32 %s26, %s27
        %v346 = vlaneseq
        %v347 = vand.u32 %v346, 127
        %v348 = vadd.s32 %v347, 128
        %s349 = smul.u32 %s345, 256
        %v350 = vstv %s349
        %v351 = vadd.s32 %v350, %v347
        %v352 = vadd.s32 %v350, %v348
        %vm353 = vcmp.lt.s32.totalorder %v351, 256
        %vm354 = vcmp.lt.s32.totalorder %v352, 256
        %v355 = vld [vmem:[%s245] sm:$0xf]
        %v356 = vmul.f32 %v336, %v343
        %v357 = vmul.f32 %v342, %v344
        %v358 = vsel %vm353, %v356, 0.0
        %v359 = vsel %vm354, %v357, 0.0
        %v360 = vsel %vm353, %v336, 0.0
        %v361 = vsel %vm354, %v342, 0.0
        %vm362 = vcmask 1040384
        %v363 = vsel %vm362, %v358, %v360
        %v364 = vsel %vm362, %v359, %v361
        %v367 = vrot.slane %v364, 6
        %vm368 = vcmask 1041408
        %v369 = vsel %vm368, %v363, %v367
        %v371 = vadd.f32 %v355, %v369
        %372 = vst [vmem:[%s245] sm:$0xf] %v371
        %s373 = sand.u32 %s130, 1
        %s374 = scalar_lea.sflag [#allocation4], %s373
        %s375 = sand.u32 %s130, 1
        %s376 = smul.addr %s375, 4
        %s377 = scalar_lea.vmem [#allocation5], %s376
        // Predicated region
        $region41: #{tpu_custom_call.1} parent=31 // pred_check
          %p378 = pneg %p140
        $region42: #{tpu_custom_call.1} parent=31 // pred_check_branch
          %380 = sbr.rel (%p378) target = $region44
        $region43: #{tpu_custom_call.1} parent=31 // pred_region
          %382 = vsyncadd %s374, 0
          %s383 = smul.addr %s26, 2
          %s384 = smul.addr %s25, 2
          %s385 = sadd.s32 %s383, %s384
          %s386 = smul.addr %s385, 2
          %s387 = scalar_lea.hbm %s3, %s386
          %s389 = sshll.u32 %s377, 4
          %s390 = int_to_ptr.vmem [resolvable:$true] %s389
          %s391 = sshll.u32 %s387, 4
          %s392 = int_to_ptr.hbm [resolvable:$true] %s391
          %394 = dma.vmem_to_hbm [thread:$0]  %s390, 64, %s392, %s374
        $region44: #{tpu_custom_call.1} parent=31 // pred_fallthru
          _
      $region32: #{tpu_custom_call.1} parent=5 // pred_fallthru
        _
      %p395 = scmp.le.s32.totalorder 2, %s15
      // Predicated region
      $region45: #{tpu_custom_call.1} parent=5 // pred_check
        %p396 = pneg %p395
      $region46: #{tpu_custom_call.1} parent=5 // pred_check_branch
        %398 = sbr.rel (%p396) target = $region48
      $region47: #{tpu_custom_call.1} parent=5 // pred_region
        %s399 = ssub.s32 %s15, 2
        // Predicated region
        $region49: #{tpu_custom_call.1} parent=47 // pred_check
          %p400 = pneg %p146
        $region50: #{tpu_custom_call.1} parent=47 // pred_check_branch
          %402 = sbr.rel (%p400) target = $region52
        $region51: #{tpu_custom_call.1} parent=47 // pred_region
          %s403 = sand.u32 %s131, 1
          %s404 = scalar_lea.sflag [#allocation4], %s403
          %s405 = sand.u32 %s131, 1
          %s406 = smul.addr %s405, 4
          %s407 = scalar_lea.vmem [#allocation5], %s406
          %409 = dma.done %s404, 64
        $region52: #{tpu_custom_call.1} parent=47 // pred_fallthru
          _
      $region48: #{tpu_custom_call.1} parent=5 // pred_fallthru
        _
    $region6: #{tpu_custom_call.1} parent=1 // loop_footer
      %s19 = sadd.s32 1, %s15
    $region7: #{tpu_custom_call.1} parent=1 // loop_footer_branch
      %14 = sbr.rel target = $region3
    $region8: #{tpu_custom_call.1} parent=1 // loop_exit
      _
    %410 = vsyncpa [#allocation3], 1
    %s411 = scalar_lea.sflag [#allocation3], 1
    %412 = vsyncpa %s411, 1
    %413 = vsyncpa [#allocation4], 1
    %s414 = scalar_lea.sflag [#allocation4], 1
    %415 = vsyncpa %s414, 1

</llo_original>
